<compile_context>
chip_gen: v7x
topology: tpu7x:2x2x1
jax: 0.10.0
libtpu: 0.0.40
codegen_flags: <defaults>
</compile_context>

<pallas_src>
import numpy as np
import jax
import jax.numpy as jnp
from jax.experimental import pallas as pl
from jax.experimental.pallas import tpu as pltpu

# ---------------- configuration (small, consistent with the module) ----------------
N = 2
IN_PLANES = 12
OUT_PLANES = 24          # bottleneck = 24 // 4 = 6 ; expand out = 24 - 12 = 12 (concat)
GROUPS = 3
H = W = 16
HO = WO = 8              # stride-2 output
HOWO = HO * WO                           # 64   lanes per image
NHOWO = N * HOWO                         # 128  lanes per parity plane (= output width)
LANES = 4 * NHOWO                        # 512  (= N*H*W, parity-plane layout)
CB = OUT_PLANES // 4                     # 6    bottleneck channels
C_EXP = OUT_PLANES - IN_PLANES           # 12   expand-conv output channels
C_TOTAL = IN_PLANES + C_EXP              # 24
STK = IN_PLANES + CB + 1                 # 19   rows of the stacked final-matmul operand
EPS = 1e-5


# ------------------------------ Pallas kernel ---------------------------------------
def shuffle_unit_kernel(x_ref, w1_ref, wdw_ref, wc_ref, out_ref, y1_ref, stk_ref):
    # grouped 1x1 compress + BN1 (scale & shift) + channel_shuffle folded into w1
    # (shift enters via the ones row appended to x), then ReLU.  The lane layout
    # (parity plane p, image n, ho, wo) is preserved by the pointwise conv.
    y1_ref[...] = jnp.maximum(
        jnp.dot(w1_ref[...], x_ref[...], preferred_element_type=jnp.float32), 0.0)

    # boundary masks for the pad=1 taps (positions whose source pixel is the zero pad)
    lane = jax.lax.broadcasted_iota(jnp.int32, (1, NHOWO), 1)
    m_h = ((lane % HOWO) >= WO).astype(jnp.float32)     # ho >= 1
    m_w = ((lane % WO) >= 1).astype(jnp.float32)        # wo >= 1

    wdw = wdw_ref[...]                                   # (CB, 9) dw weights * BN2 scale
    res = jnp.zeros((IN_PLANES, NHOWO), jnp.float32)     # 9-tap sum for the avg-pool
    y2 = jnp.zeros((CB, NHOWO), jnp.float32)             # depthwise output (BN2-scaled)
    for kh in range(3):
        for kw in range(3):
            # input pixel (2*ho + kh - 1, 2*wo + kw - 1) lives in parity plane (ph, pw)
            # at spatial index (ho - sh/WO, wo - sw):
            ph = 0 if kh == 1 else 1
            pw = 0 if kw == 1 else 1
            sh = WO if kh == 0 else 0                    # one output row  = WO lanes
            sw = 1 if kw == 0 else 0                     # one output col  = 1 lane
            off = (2 * ph + pw) * NHOWO - sh - sw        # static 128-lane window
            xs = x_ref[0:IN_PLANES, off:off + NHOWO]     # residual path taps
            ys = y1_ref[:, off:off + NHOWO]              # depthwise path taps
            if sh:
                xs, ys = xs * m_h, ys * m_h
            if sw:
                xs, ys = xs * m_w, ys * m_w
            res = res + xs
            t = kh * 3 + kw
            y2 = y2 + ys * wdw[:, t:t + 1]

    # stack [res ; y2 ; ones]: residual*(1/9), the grouped 1x1 expand (+BN3), its bias
    # and the final ReLU collapse into ONE matmul with a single full-tile (24,128) store.
    stk_ref[0:IN_PLANES, :] = res
    stk_ref[IN_PLANES:IN_PLANES + CB, :] = y2
    stk_ref[IN_PLANES + CB:STK, :] = jnp.ones((1, NHOWO), jnp.float32)
    out_ref[...] = jnp.maximum(
        jnp.dot(wc_ref[...], stk_ref[...], preferred_element_type=jnp.float32), 0.0)


def shuffle_unit_pallas(x_aug, w1a, wdw, wcomb):
    vmem = pl.BlockSpec(memory_space=pltpu.MemorySpace.VMEM)
    return pl.pallas_call(
        shuffle_unit_kernel,
        out_shape=jax.ShapeDtypeStruct((C_TOTAL, NHOWO), jnp.float32),
        in_specs=[vmem, vmem, vmem, vmem],
        out_specs=vmem,
        scratch_shapes=[pltpu.VMEM((CB, LANES), jnp.float32),    # y1 (shuffled bottleneck)
                        pltpu.VMEM((STK, NHOWO), jnp.float32)],  # stacked final operand
    )(x_aug, w1a, wdw, wcomb)


# ------------------------------ wrapper glue -----------------------------------------
def block_diag_1x1(w_g, groups):
    """Grouped 1x1 conv weight (C_out, C_in//g) -> dense block-diagonal (C_out, C_in)."""
    c_out, cinpg = w_g.shape
    coutpg = c_out // groups
    full = jnp.zeros((c_out, cinpg * groups), w_g.dtype)
    for g in range(groups):
        full = full.at[g * coutpg:(g + 1) * coutpg,
                       g * cinpg:(g + 1) * cinpg].set(w_g[g * coutpg:(g + 1) * coutpg])
    return full


def fold_bn(conv_bias, gamma, beta, mean, var):
    """Inference BN(conv(x)+b) == conv(x)*scale + shift (per channel)."""
    scale = gamma / jnp.sqrt(var + EPS)
    shift = beta + (conv_bias - mean) * scale
    return scale[:, None].astype(jnp.float32), shift[:, None].astype(jnp.float32)


def shuffle_perm(channels, groups):
    n = channels // groups
    return jnp.array([(c % groups) * n + (c // groups) for c in range(channels)],
                     dtype=jnp.int32)


def fold_params(p):
    """Fold BN scale/shift, grouped-conv block structure, the channel shuffle and the
    residual 1/9 scale into four small dense operands."""
    perm = shuffle_perm(CB, GROUPS)
    s1, sh1 = fold_bn(p['b1'], *p['bn1'])
    W1f = (s1 * block_diag_1x1(p['w1'][:, :, 0, 0], GROUPS))[perm]   # shuffle + BN folded
    b1f = sh1[perm]
    w1a = jnp.concatenate([W1f, b1f], axis=1)                        # (CB, IN_PLANES + 1)

    s2, sh2 = fold_bn(p['bdw'], *p['bn2'])
    wdw = s2 * p['wdw'][:, 0].reshape(CB, 9)                          # (CB, 9)

    s3, sh3 = fold_bn(p['b3'], *p['bn3'])
    W3f = s3 * block_diag_1x1(p['w3'][:, :, 0, 0], GROUPS)            # (C_EXP, CB)
    b3f = sh3 + W3f @ sh2                                             # BN2 shift folded fwd

    wcomb = jnp.zeros((C_TOTAL, STK), jnp.float32)
    wcomb = wcomb.at[0:IN_PLANES, 0:IN_PLANES].set(jnp.eye(IN_PLANES, dtype=jnp.float32) / 9.0)
    wcomb = wcomb.at[IN_PLANES:, IN_PLANES:IN_PLANES + CB].set(W3f)
    wcomb = wcomb.at[IN_PLANES:, IN_PLANES + CB:].set(b3f)
    return w1a, wdw, wcomb


def to_parity_plane_layout(x):
    """(N,C,H,W) -> (C+1, 4*N*HO*WO) with
    lane = (2*(h%2)+(w%2))*N*HOWO + n*HOWO + (h//2)*WO + (w//2),
    plus a trailing ones row (carries the folded compress-conv bias)."""
    xp = (x.reshape(N, IN_PLANES, HO, 2, WO, 2)
            .transpose(1, 3, 5, 0, 2, 4)
            .reshape(IN_PLANES, LANES))
    return jnp.concatenate([xp, jnp.ones((1, LANES), jnp.float32)], axis=0)


def from_lane_layout(out_wide):
    """(C_TOTAL, N*HO*WO) -> (N, C_TOTAL, HO, WO)."""
    return out_wide.reshape(C_TOTAL, N, HO, WO).transpose(1, 0, 2, 3)


# ------------------------------ pure-JAX reference -----------------------------------
def reference_forward(x, p):
    dn = ('NCHW', 'OIHW', 'NCHW')
    bn = lambda y, g, b, m, v: ((y - m[None, :, None, None])
                                / jnp.sqrt(v[None, :, None, None] + EPS)
                                * g[None, :, None, None] + b[None, :, None, None])
    # compress 1x1 (grouped) + BN + ReLU
    y = jax.lax.conv_general_dilated(x, p['w1'], (1, 1), 'VALID',
                                     feature_group_count=GROUPS, dimension_numbers=dn)
    y = jnp.maximum(bn(y + p['b1'][None, :, None, None], *p['bn1']), 0.0)
    # channel shuffle
    nb, c, hh, ww = y.shape
    y = y.reshape(nb, GROUPS, c // GROUPS, hh, ww).transpose(0, 2, 1, 3, 4).reshape(nb, c, hh, ww)
    # depthwise 3x3 stride 2 pad 1 + BN
    y = jax.lax.conv_general_dilated(y, p['wdw'], (2, 2), [(1, 1), (1, 1)],
                                     feature_group_count=CB, dimension_numbers=dn)
    y = bn(y + p['bdw'][None, :, None, None], *p['bn2'])
    # expand 1x1 (grouped) + BN
    y = jax.lax.conv_general_dilated(y, p['w3'], (1, 1), 'VALID',
                                     feature_group_count=GROUPS, dimension_numbers=dn)
    y = bn(y + p['b3'][None, :, None, None], *p['bn3'])
    # residual avg pool 3x3 s2 p1 (count_include_pad=True)
    res = jax.lax.reduce_window(x, 0.0, jax.lax.add, (1, 1, 3, 3), (1, 1, 2, 2),
                                [(0, 0), (0, 0), (1, 1), (1, 1)]) / 9.0
    return jnp.maximum(jnp.concatenate([res, y], axis=1), 0.0)


# -------------------------------------- main ------------------------------------------
if __name__ == "__main__":
    key = jax.random.PRNGKey(0)
    ks = jax.random.split(key, 20)
    nrm = lambda k, s, sc=0.2: sc * jax.random.normal(k, s, jnp.float32)

    p = {
        'w1':  nrm(ks[0], (CB, IN_PLANES // GROUPS, 1, 1)),
        'b1':  nrm(ks[1], (CB,), 0.1),
        'bn1': (1.0 + nrm(ks[2], (CB,), 0.1), nrm(ks[3], (CB,), 0.1),
                nrm(ks[4], (CB,), 0.1), jax.random.uniform(ks[5], (CB,), jnp.float32, 0.5, 1.5)),
        'wdw': nrm(ks[6], (CB, 1, 3, 3)),
        'bdw': nrm(ks[7], (CB,), 0.1),
        'bn2': (1.0 + nrm(ks[8], (CB,), 0.1), nrm(ks[9], (CB,), 0.1),
                nrm(ks[10], (CB,), 0.1), jax.random.uniform(ks[11], (CB,), jnp.float32, 0.5, 1.5)),
        'w3':  nrm(ks[12], (C_EXP, CB // GROUPS, 1, 1)),
        'b3':  nrm(ks[13], (C_EXP,), 0.1),
        'bn3': (1.0 + nrm(ks[14], (C_EXP,), 0.1), nrm(ks[15], (C_EXP,), 0.1),
                nrm(ks[16], (C_EXP,), 0.1), jax.random.uniform(ks[17], (C_EXP,), jnp.float32, 0.5, 1.5)),
    }
    x = jax.random.normal(ks[18], (N, IN_PLANES, H, W), jnp.float32)

    # ---- fold parameters + layout plumbing (wrapper) ----
    w1a, wdw, wcomb = fold_params(p)
    x_aug = to_parity_plane_layout(x)

    out_wide = shuffle_unit_pallas(x_aug, w1a, wdw, wcomb)
    out = from_lane_layout(out_wide)
    jax.block_until_ready(out)

    ref = reference_forward(x, p)
    np.testing.assert_allclose(np.asarray(out), np.asarray(ref), rtol=1e-4, atol=1e-4)
    print("KERNEL_OK")
</pallas_src>

<mosaic_0001>
module attributes {stable_mosaic.version = 11 : i64} {
  func.func @shuffle_unit_kernel(%arg0: memref<13x512xf32, #tpu.memory_space<vmem>>, %arg1: memref<6x13xf32, #tpu.memory_space<vmem>>, %arg2: memref<6x9xf32, #tpu.memory_space<vmem>>, %arg3: memref<24x19xf32, #tpu.memory_space<vmem>>, %arg4: memref<24x128xf32, #tpu.memory_space<vmem>>, %arg5: memref<6x512xf32, #tpu.memory_space<vmem>>, %arg6: memref<19x128xf32, #tpu.memory_space<vmem>>) attributes {dimension_semantics = [], scalar_prefetch = 0 : i64, scratch_operands = 2 : i64, tpu.core_type = #tpu.core_type<tc>} {
    %c0 = arith.constant 0 : index
    %c0_0 = arith.constant 0 : index
    %0 = vector.load %arg1[%c0, %c0_0] : memref<6x13xf32, #tpu.memory_space<vmem>>, vector<6x13xf32>
    %c0_1 = arith.constant 0 : index
    %c0_2 = arith.constant 0 : index
    %1 = vector.load %arg0[%c0_1, %c0_2] : memref<13x512xf32, #tpu.memory_space<vmem>>, vector<13x512xf32>
    %cst = arith.constant dense<0.000000e+00> : vector<6x512xf32>
    %2 = tpu.matmul %0, %1, %cst {dimension_numbers = #tpu.dot_dimension_numbers<[1], [0], [0], [1], [0, 0, 1, 1], [], []>} : vector<6x13xf32>, vector<13x512xf32>, vector<6x512xf32> -> vector<6x512xf32>
    %cst_3 = arith.constant 0.000000e+00 : f32
    %3 = vector.broadcast %cst_3 : f32 to vector<6x512xf32>
    %4 = arith.maximumf %2, %3 : vector<6x512xf32>
    %c0_4 = arith.constant 0 : index
    %c0_5 = arith.constant 0 : index
    %5 = vector.load %arg5[%c0_4, %c0_5] : memref<6x512xf32, #tpu.memory_space<vmem>>, vector<6x512xf32>
    tpu.vector_store %arg5[%c0_4, %c0_5], %4 {strides = array<i32>} : memref<6x512xf32, #tpu.memory_space<vmem>>, vector<6x512xf32>,
    %6 = tpu.iota {dimensions = array<i32: 1>} : vector<1x128xi32>
    %c64_i32 = arith.constant 64 : i32
    %c0_i32 = arith.constant 0 : i32
    %7 = arith.cmpi eq, %c64_i32, %c0_i32 : i32
    %c1_i32 = arith.constant 1 : i32
    %8 = arith.select %7, %c1_i32, %c64_i32 : i32
    %9 = vector.broadcast %8 : i32 to vector<1x128xi32>
    %10 = arith.remsi %6, %9 : vector<1x128xi32>
    %c0_i32_6 = arith.constant 0 : i32
    %11 = vector.broadcast %c0_i32_6 : i32 to vector<1x128xi32>
    %12 = arith.cmpi ne, %10, %11 : vector<1x128xi32>
    %c0_i32_7 = arith.constant 0 : i32
    %13 = vector.broadcast %c0_i32_7 : i32 to vector<1x128xi32>
    %14 = arith.cmpi slt, %10, %13 : vector<1x128xi32>
    %c0_i32_8 = arith.constant 0 : i32
    %15 = arith.cmpi slt, %8, %c0_i32_8 : i32
    %16 = vector.broadcast %15 : i1 to vector<1x128xi1>
    %17 = vector.broadcast %16 : vector<1x128xi1> to vector<1x128xi1>
    %18 = arith.xori %14, %17 : vector<1x128xi1>
    %19 = arith.andi %18, %12 : vector<1x128xi1>
    %20 = vector.broadcast %8 : i32 to vector<1x128xi32>
    %21 = arith.addi %10, %20 : vector<1x128xi32>
    %22 = arith.select %19, %21, %10 : vector<1x128xi1>, vector<1x128xi32>
    %c8_i32 = arith.constant 8 : i32
    %23 = vector.broadcast %c8_i32 : i32 to vector<1x128xi32>
    %24 = arith.cmpi sge, %22, %23 : vector<1x128xi32>
    %25 = arith.extui %24 : vector<1x128xi1> to vector<1x128xi32>
    %26 = arith.sitofp %25 : vector<1x128xi32> to vector<1x128xf32>
    %c8_i32_9 = arith.constant 8 : i32
    %c0_i32_10 = arith.constant 0 : i32
    %27 = arith.cmpi eq, %c8_i32_9, %c0_i32_10 : i32
    %c1_i32_11 = arith.constant 1 : i32
    %28 = arith.select %27, %c1_i32_11, %c8_i32_9 : i32
    %29 = vector.broadcast %28 : i32 to vector<1x128xi32>
    %30 = arith.remsi %6, %29 : vector<1x128xi32>
    %c0_i32_12 = arith.constant 0 : i32
    %31 = vector.broadcast %c0_i32_12 : i32 to vector<1x128xi32>
    %32 = arith.cmpi ne, %30, %31 : vector<1x128xi32>
    %c0_i32_13 = arith.constant 0 : i32
    %33 = vector.broadcast %c0_i32_13 : i32 to vector<1x128xi32>
    %34 = arith.cmpi slt, %30, %33 : vector<1x128xi32>
    %c0_i32_14 = arith.constant 0 : i32
    %35 = arith.cmpi slt, %28, %c0_i32_14 : i32
    %36 = vector.broadcast %35 : i1 to vector<1x128xi1>
    %37 = vector.broadcast %36 : vector<1x128xi1> to vector<1x128xi1>
    %38 = arith.xori %34, %37 : vector<1x128xi1>
    %39 = arith.andi %38, %32 : vector<1x128xi1>
    %40 = vector.broadcast %28 : i32 to vector<1x128xi32>
    %41 = arith.addi %30, %40 : vector<1x128xi32>
    %42 = arith.select %39, %41, %30 : vector<1x128xi1>, vector<1x128xi32>
    %c1_i32_15 = arith.constant 1 : i32
    %43 = vector.broadcast %c1_i32_15 : i32 to vector<1x128xi32>
    %44 = arith.cmpi sge, %42, %43 : vector<1x128xi32>
    %45 = arith.extui %44 : vector<1x128xi1> to vector<1x128xi32>
    %46 = arith.sitofp %45 : vector<1x128xi32> to vector<1x128xf32>
    %c0_16 = arith.constant 0 : index
    %c0_17 = arith.constant 0 : index
    %47 = vector.load %arg2[%c0_16, %c0_17] : memref<6x9xf32, #tpu.memory_space<vmem>>, vector<6x9xf32>
    %cst_18 = arith.constant 0.000000e+00 : f32
    %48 = vector.broadcast %cst_18 : f32 to vector<12x128xf32>
    %cst_19 = arith.constant 0.000000e+00 : f32
    %49 = vector.broadcast %cst_19 : f32 to vector<6x128xf32>
    %c0_20 = arith.constant 0 : index
    %c375 = arith.constant 375 : index
    %50 = vector.load %arg0[%c0_20, %c375] : memref<13x512xf32, #tpu.memory_space<vmem>>, vector<12x128xf32>
    %c0_21 = arith.constant 0 : index
    %c375_22 = arith.constant 375 : index
    %51 = vector.load %arg5[%c0_21, %c375_22] : memref<6x512xf32, #tpu.memory_space<vmem>>, vector<6x128xf32>
    %52 = vector.broadcast %26 : vector<1x128xf32> to vector<12x128xf32>
    %53 = arith.mulf %50, %52 : vector<12x128xf32>
    %54 = vector.broadcast %26 : vector<1x128xf32> to vector<6x128xf32>
    %55 = arith.mulf %51, %54 : vector<6x128xf32>
    %56 = vector.broadcast %46 : vector<1x128xf32> to vector<12x128xf32>
    %57 = arith.mulf %53, %56 : vector<12x128xf32>
    %58 = vector.broadcast %46 : vector<1x128xf32> to vector<6x128xf32>
    %59 = arith.mulf %55, %58 : vector<6x128xf32>
    %60 = arith.addf %48, %57 : vector<12x128xf32>
    %61 = vector.extract_strided_slice %47 {offsets = [0, 0], sizes = [6, 1], strides = [1, 1]} : vector<6x9xf32> to vector<6x1xf32>
    %62 = vector.broadcast %61 : vector<6x1xf32> to vector<6x128xf32>
    %63 = arith.mulf %59, %62 : vector<6x128xf32>
    %64 = arith.addf %49, %63 : vector<6x128xf32>
    %c0_23 = arith.constant 0 : index
    %c248 = arith.constant 248 : index
    %65 = vector.load %arg0[%c0_23, %c248] : memref<13x512xf32, #tpu.memory_space<vmem>>, vector<12x128xf32>
    %c0_24 = arith.constant 0 : index
    %c248_25 = arith.constant 248 : index
    %66 = vector.load %arg5[%c0_24, %c248_25] : memref<6x512xf32, #tpu.memory_space<vmem>>, vector<6x128xf32>
    %67 = vector.broadcast %26 : vector<1x128xf32> to vector<12x128xf32>
    %68 = arith.mulf %65, %67 : vector<12x128xf32>
    %69 = vector.broadcast %26 : vector<1x128xf32> to vector<6x128xf32>
    %70 = arith.mulf %66, %69 : vector<6x128xf32>
    %71 = arith.addf %60, %68 : vector<12x128xf32>
    %72 = vector.extract_strided_slice %47 {offsets = [0, 1], sizes = [6, 1], strides = [1, 1]} : vector<6x9xf32> to vector<6x1xf32>
    %73 = vector.broadcast %72 : vector<6x1xf32> to vector<6x128xf32>
    %74 = arith.mulf %70, %73 : vector<6x128xf32>
    %75 = arith.addf %64, %74 : vector<6x128xf32>
    %c0_26 = arith.constant 0 : index
    %c376 = arith.constant 376 : index
    %76 = vector.load %arg0[%c0_26, %c376] : memref<13x512xf32, #tpu.memory_space<vmem>>, vector<12x128xf32>
    %c0_27 = arith.constant 0 : index
    %c376_28 = arith.constant 376 : index
    %77 = vector.load %arg5[%c0_27, %c376_28] : memref<6x512xf32, #tpu.memory_space<vmem>>, vector<6x128xf32>
    %78 = vector.broadcast %26 : vector<1x128xf32> to vector<12x128xf32>
    %79 = arith.mulf %76, %78 : vector<12x128xf32>
    %80 = vector.broadcast %26 : vector<1x128xf32> to vector<6x128xf32>
    %81 = arith.mulf %77, %80 : vector<6x128xf32>
    %82 = arith.addf %71, %79 : vector<12x128xf32>
    %83 = vector.extract_strided_slice %47 {offsets = [0, 2], sizes = [6, 1], strides = [1, 1]} : vector<6x9xf32> to vector<6x1xf32>
    %84 = vector.broadcast %83 : vector<6x1xf32> to vector<6x128xf32>
    %85 = arith.mulf %81, %84 : vector<6x128xf32>
    %86 = arith.addf %75, %85 : vector<6x128xf32>
    %c0_29 = arith.constant 0 : index
    %c127 = arith.constant 127 : index
    %87 = vector.load %arg0[%c0_29, %c127] : memref<13x512xf32, #tpu.memory_space<vmem>>, vector<12x128xf32>
    %c0_30 = arith.constant 0 : index
    %c127_31 = arith.constant 127 : index
    %88 = vector.load %arg5[%c0_30, %c127_31] : memref<6x512xf32, #tpu.memory_space<vmem>>, vector<6x128xf32>
    %89 = vector.broadcast %46 : vector<1x128xf32> to vector<12x128xf32>
    %90 = arith.mulf %87, %89 : vector<12x128xf32>
    %91 = vector.broadcast %46 : vector<1x128xf32> to vector<6x128xf32>
    %92 = arith.mulf %88, %91 : vector<6x128xf32>
    %93 = arith.addf %82, %90 : vector<12x128xf32>
    %94 = vector.extract_strided_slice %47 {offsets = [0, 3], sizes = [6, 1], strides = [1, 1]} : vector<6x9xf32> to vector<6x1xf32>
    %95 = vector.broadcast %94 : vector<6x1xf32> to vector<6x128xf32>
    %96 = arith.mulf %92, %95 : vector<6x128xf32>
    %97 = arith.addf %86, %96 : vector<6x128xf32>
    %c0_32 = arith.constant 0 : index
    %c0_33 = arith.constant 0 : index
    %98 = vector.load %arg0[%c0_32, %c0_33] : memref<13x512xf32, #tpu.memory_space<vmem>>, vector<12x128xf32>
    %c0_34 = arith.constant 0 : index
    %c0_35 = arith.constant 0 : index
    %99 = vector.load %arg5[%c0_34, %c0_35] : memref<6x512xf32, #tpu.memory_space<vmem>>, vector<6x128xf32>
    %100 = arith.addf %93, %98 : vector<12x128xf32>
    %101 = vector.extract_strided_slice %47 {offsets = [0, 4], sizes = [6, 1], strides = [1, 1]} : vector<6x9xf32> to vector<6x1xf32>
    %102 = vector.broadcast %101 : vector<6x1xf32> to vector<6x128xf32>
    %103 = arith.mulf %99, %102 : vector<6x128xf32>
    %104 = arith.addf %97, %103 : vector<6x128xf32>
    %c0_36 = arith.constant 0 : index
    %c128 = arith.constant 128 : index
    %105 = vector.load %arg0[%c0_36, %c128] : memref<13x512xf32, #tpu.memory_space<vmem>>, vector<12x128xf32>
    %c0_37 = arith.constant 0 : index
    %c128_38 = arith.constant 128 : index
    %106 = vector.load %arg5[%c0_37, %c128_38] : memref<6x512xf32, #tpu.memory_space<vmem>>, vector<6x128xf32>
    %107 = arith.addf %100, %105 : vector<12x128xf32>
    %108 = vector.extract_strided_slice %47 {offsets = [0, 5], sizes = [6, 1], strides = [1, 1]} : vector<6x9xf32> to vector<6x1xf32>
    %109 = vector.broadcast %108 : vector<6x1xf32> to vector<6x128xf32>
    %110 = arith.mulf %106, %109 : vector<6x128xf32>
    %111 = arith.addf %104, %110 : vector<6x128xf32>
    %c0_39 = arith.constant 0 : index
    %c383 = arith.constant 383 : index
    %112 = vector.load %arg0[%c0_39, %c383] : memref<13x512xf32, #tpu.memory_space<vmem>>, vector<12x128xf32>
    %c0_40 = arith.constant 0 : index
    %c383_41 = arith.constant 383 : index
    %113 = vector.load %arg5[%c0_40, %c383_41] : memref<6x512xf32, #tpu.memory_space<vmem>>, vector<6x128xf32>
    %114 = vector.broadcast %46 : vector<1x128xf32> to vector<12x128xf32>
    %115 = arith.mulf %112, %114 : vector<12x128xf32>
    %116 = vector.broadcast %46 : vector<1x128xf32> to vector<6x128xf32>
    %117 = arith.mulf %113, %116 : vector<6x128xf32>
    %118 = arith.addf %107, %115 : vector<12x128xf32>
    %119 = vector.extract_strided_slice %47 {offsets = [0, 6], sizes = [6, 1], strides = [1, 1]} : vector<6x9xf32> to vector<6x1xf32>
    %120 = vector.broadcast %119 : vector<6x1xf32> to vector<6x128xf32>
    %121 = arith.mulf %117, %120 : vector<6x128xf32>
    %122 = arith.addf %111, %121 : vector<6x128xf32>
    %c0_42 = arith.constant 0 : index
    %c256 = arith.constant 256 : index
    %123 = vector.load %arg0[%c0_42, %c256] : memref<13x512xf32, #tpu.memory_space<vmem>>, vector<12x128xf32>
    %c0_43 = arith.constant 0 : index
    %c256_44 = arith.constant 256 : index
    %124 = vector.load %arg5[%c0_43, %c256_44] : memref<6x512xf32, #tpu.memory_space<vmem>>, vector<6x128xf32>
    %125 = arith.addf %118, %123 : vector<12x128xf32>
    %126 = vector.extract_strided_slice %47 {offsets = [0, 7], sizes = [6, 1], strides = [1, 1]} : vector<6x9xf32> to vector<6x1xf32>
    %127 = vector.broadcast %126 : vector<6x1xf32> to vector<6x128xf32>
    %128 = arith.mulf %124, %127 : vector<6x128xf32>
    %129 = arith.addf %122, %128 : vector<6x128xf32>
    %c0_45 = arith.constant 0 : index
    %c384 = arith.constant 384 : index
    %130 = vector.load %arg0[%c0_45, %c384] : memref<13x512xf32, #tpu.memory_space<vmem>>, vector<12x128xf32>
    %c0_46 = arith.constant 0 : index
    %c384_47 = arith.constant 384 : index
    %131 = vector.load %arg5[%c0_46, %c384_47] : memref<6x512xf32, #tpu.memory_space<vmem>>, vector<6x128xf32>
    %132 = arith.addf %125, %130 : vector<12x128xf32>
    %133 = vector.extract_strided_slice %47 {offsets = [0, 8], sizes = [6, 1], strides = [1, 1]} : vector<6x9xf32> to vector<6x1xf32>
    %134 = vector.broadcast %133 : vector<6x1xf32> to vector<6x128xf32>
    %135 = arith.mulf %131, %134 : vector<6x128xf32>
    %136 = arith.addf %129, %135 : vector<6x128xf32>
    %c0_48 = arith.constant 0 : index
    %c0_49 = arith.constant 0 : index
    %137 = vector.load %arg6[%c0_48, %c0_49] : memref<19x128xf32, #tpu.memory_space<vmem>>, vector<12x128xf32>
    tpu.vector_store %arg6[%c0_48, %c0_49], %132 {strides = array<i32>} : memref<19x128xf32, #tpu.memory_space<vmem>>, vector<12x128xf32>,
    %c12 = arith.constant 12 : index
    %c0_50 = arith.constant 0 : index
    %138 = vector.load %arg6[%c12, %c0_50] : memref<19x128xf32, #tpu.memory_space<vmem>>, vector<6x128xf32>
    tpu.vector_store %arg6[%c12, %c0_50], %136 {strides = array<i32>} : memref<19x128xf32, #tpu.memory_space<vmem>>, vector<6x128xf32>,
    %cst_51 = arith.constant 1.000000e+00 : f32
    %139 = vector.broadcast %cst_51 : f32 to vector<1x128xf32>
    %c18 = arith.constant 18 : index
    %c0_52 = arith.constant 0 : index
    %140 = vector.load %arg6[%c18, %c0_52] : memref<19x128xf32, #tpu.memory_space<vmem>>, vector<1x128xf32>
    tpu.vector_store %arg6[%c18, %c0_52], %139 {strides = array<i32>} : memref<19x128xf32, #tpu.memory_space<vmem>>, vector<1x128xf32>,
    %c0_53 = arith.constant 0 : index
    %c0_54 = arith.constant 0 : index
    %141 = vector.load %arg3[%c0_53, %c0_54] : memref<24x19xf32, #tpu.memory_space<vmem>>, vector<24x19xf32>
    %c0_55 = arith.constant 0 : index
    %c0_56 = arith.constant 0 : index
    %142 = vector.load %arg6[%c0_55, %c0_56] : memref<19x128xf32, #tpu.memory_space<vmem>>, vector<19x128xf32>
    %cst_57 = arith.constant dense<0.000000e+00> : vector<24x128xf32>
    %143 = tpu.matmul %141, %142, %cst_57 {dimension_numbers = #tpu.dot_dimension_numbers<[1], [0], [0], [1], [0, 0, 1, 1], [], []>} : vector<24x19xf32>, vector<19x128xf32>, vector<24x128xf32> -> vector<24x128xf32>
    %cst_58 = arith.constant 0.000000e+00 : f32
    %144 = vector.broadcast %cst_58 : f32 to vector<24x128xf32>
    %145 = arith.maximumf %143, %144 : vector<24x128xf32>
    %c0_59 = arith.constant 0 : index
    %c0_60 = arith.constant 0 : index
    %146 = vector.load %arg4[%c0_59, %c0_60] : memref<24x128xf32, #tpu.memory_space<vmem>>, vector<24x128xf32>
    tpu.vector_store %arg4[%c0_59, %c0_60], %145 {strides = array<i32>} : memref<24x128xf32, #tpu.memory_space<vmem>>, vector<24x128xf32>,
    return
  }
}

</mosaic_0001>

<llo_original>
// kernel: tpu_custom_call.1
$region0: #{tpu_custom_call.1}
  #allocation0 [shape = 'u32[]', space=smem, size = 0x4, offset = 0x4, fixed_abs, tag = 'smem constant byte address 0x4 - core index']
  #allocation1 [shape = 'u32[144,128]{1,0:T(1,128)}', space=vmem, size = 0x12000, scoped, tag = 'internal scratch']
  #allocation2 [shape = 'f32[6,512]{1,0:T(8,128)}', space=vmem, size = 0x4000, scoped, tag = 'scratch operand']
  #allocation3 [shape = 'f32[19,128]{1,0:T(8,128)}', space=vmem, size = 0x3000, scoped, tag = 'scratch operand']
  %s0 = inlined_call_operand.hbm [shape: f32[13,512], index: 0, kind: input, shape index: {}]
  %s1 = inlined_call_operand.hbm [shape: f32[6,13], index: 1, kind: input, shape index: {}]
  %s2 = inlined_call_operand.hbm [shape: f32[6,9], index: 2, kind: input, shape index: {}]
  %s3 = inlined_call_operand.hbm [shape: f32[24,19], index: 3, kind: input, shape index: {}]
  %s4 = inlined_call_operand.hbm [shape: f32[24,128], index: 4, kind: output, shape index: {}]
  %s5 = sld [smem:[#allocation0]]
  $region42: #{tpu_custom_call.1} parent=0
    _
  %s7 = ssub.s32 1, %s5
  %s8 = scalar_select 0, %s7, %s5
  $region1: #{tpu_custom_call.1} parent=0
    #allocation4 [shape = 'u8[32768]{0}', space=vmem, size = 0x8000, scoped, tag = 'input window, operand 0, single buffered']
    #allocation5 [shape = 's32[1]{0}', space=sflag, size = 0x4, scoped, tag = 'scoped memory for tpu_custom_call.1']
    #allocation6 [shape = 's32[1]{0}', space=sflag, size = 0x4, scoped, tag = 'scoped memory for tpu_custom_call.1']
    #allocation7 [shape = 'u8[4096]{0}', space=vmem, size = 0x1000, scoped, tag = 'input window, operand 1, single buffered']
    #allocation8 [shape = 's32[1]{0}', space=sflag, size = 0x4, scoped, tag = 'scoped memory for tpu_custom_call.1']
    #allocation9 [shape = 'u8[4096]{0}', space=vmem, size = 0x1000, scoped, tag = 'input window, operand 2, single buffered']
    #allocation10 [shape = 'u8[12288]{0}', space=vmem, size = 0x3000, scoped, tag = 'input window, operand 3, single buffered']
    #allocation11 [shape = 's32[1]{0}', space=sflag, size = 0x4, scoped, tag = 'scoped memory for tpu_custom_call.1']
    #allocation12 [shape = 'u8[12288]{0}', space=vmem, size = 0x3000, scoped, tag = 'output window, operand 0, single buffered']
    %9 = vsyncpa [#allocation5], 0
    %10 = vsyncpa [#allocation8], 0
    %11 = vsyncpa [#allocation11], 0
    %12 = vsyncpa [#allocation6], 0
    // Predicated region
    $region2: #{tpu_custom_call.1} parent=1 // pred_check
      _
    $region3: #{tpu_custom_call.1} parent=1 // pred_check_branch
      %14 = sbr.rel (0) target = $region5
    $region4: #{tpu_custom_call.1} parent=1 // pred_region
      %s16 = ssub.s32 1024, 1024
      %17 = vsyncadd [#allocation5], %s16
      %s18 = sshll.u32 [#allocation4], 4
      %s19 = int_to_ptr.vmem [resolvable:$true] %s18
      %24 = dma.hbm_to_vmem [thread:$0]  %s0, 1024, %s19, [#allocation5], 512, 512, 32
    $region5: #{tpu_custom_call.1} parent=1 // pred_fallthru
      _
    // Predicated region
    $region6: #{tpu_custom_call.1} parent=1 // pred_check
      _
    $region7: #{tpu_custom_call.1} parent=1 // pred_check_branch
      %26 = sbr.rel (0) target = $region9
    $region8: #{tpu_custom_call.1} parent=1 // pred_region
      %s28 = ssub.s32 128, 128
      %29 = vsyncadd [#allocation8], %s28
      %s31 = sshll.u32 [#allocation7], 4
      %s32 = int_to_ptr.vmem [resolvable:$true] %s31
      %34 = dma.hbm_to_vmem [thread:$0]  %s1, 128, %s32, [#allocation8]
    $region9: #{tpu_custom_call.1} parent=1 // pred_fallthru
      _
    // Predicated region
    $region10: #{tpu_custom_call.1} parent=1 // pred_check
      _
    $region11: #{tpu_custom_call.1} parent=1 // pred_check_branch
      %36 = sbr.rel (0) target = $region13
    $region12: #{tpu_custom_call.1} parent=1 // pred_region
      %s38 = ssub.s32 128, 128
      %39 = vsyncadd [#allocation8], %s38
      %s41 = sshll.u32 [#allocation9], 4
      %s42 = int_to_ptr.vmem [resolvable:$true] %s41
      %44 = dma.hbm_to_vmem [thread:$0]  %s2, 128, %s42, [#allocation8]
    $region13: #{tpu_custom_call.1} parent=1 // pred_fallthru
      _
    // Predicated region
    $region14: #{tpu_custom_call.1} parent=1 // pred_check
      _
    $region15: #{tpu_custom_call.1} parent=1 // pred_check_branch
      %46 = sbr.rel (0) target = $region17
    $region16: #{tpu_custom_call.1} parent=1 // pred_region
      %s48 = ssub.s32 384, 384
      %49 = vsyncadd [#allocation11], %s48
      %s50 = sshll.u32 [#allocation10], 4
      %s51 = int_to_ptr.vmem [resolvable:$true] %s50
      %56 = dma.hbm_to_vmem [thread:$0]  %s3, 384, %s51, [#allocation11], 128, 128, 8
    $region17: #{tpu_custom_call.1} parent=1 // pred_fallthru
      _
    // Predicated region
    $region18: #{tpu_custom_call.1} parent=1 // pred_check
      _
    $region19: #{tpu_custom_call.1} parent=1 // pred_check_branch
      %58 = sbr.rel (0) target = $region21
    $region20: #{tpu_custom_call.1} parent=1 // pred_region
      %59 = dma.done [#allocation5], 1024
    $region21: #{tpu_custom_call.1} parent=1 // pred_fallthru
      _
    // Predicated region
    $region22: #{tpu_custom_call.1} parent=1 // pred_check
      _
    $region23: #{tpu_custom_call.1} parent=1 // pred_check_branch
      %61 = sbr.rel (0) target = $region25
    $region24: #{tpu_custom_call.1} parent=1 // pred_region
      %62 = dma.done [#allocation8], 128
    $region25: #{tpu_custom_call.1} parent=1 // pred_fallthru
      _
    // Predicated region
    $region26: #{tpu_custom_call.1} parent=1 // pred_check
      _
    $region27: #{tpu_custom_call.1} parent=1 // pred_check_branch
      %64 = sbr.rel (0) target = $region29
    $region28: #{tpu_custom_call.1} parent=1 // pred_region
      %65 = dma.done [#allocation8], 128
    $region29: #{tpu_custom_call.1} parent=1 // pred_fallthru
      _
    // Predicated region
    $region30: #{tpu_custom_call.1} parent=1 // pred_check
      _
    $region31: #{tpu_custom_call.1} parent=1 // pred_check_branch
      %67 = sbr.rel (0) target = $region33
    $region32: #{tpu_custom_call.1} parent=1 // pred_region
      %68 = dma.done [#allocation11], 384
    $region33: #{tpu_custom_call.1} parent=1 // pred_fallthru
      _
    %v69 = vld [vmem:[#allocation7] sm:$0x3f]
    %v70 = vld [vmem:[#allocation4] sm:$0xff]
    %v71 = vld [vmem:[#allocation4 + $0x8] sm:$0xff]
    %v72 = vld [vmem:[#allocation4 + $0x10] sm:$0xff]
    %v73 = vld [vmem:[#allocation4 + $0x18] sm:$0xff]
    %v74 = vld [vmem:[#allocation4 + $0x20] sm:$0x1f]
    %v75 = vld [vmem:[#allocation4 + $0x28] sm:$0x1f]
    %v76 = vld [vmem:[#allocation4 + $0x30] sm:$0x1f]
    %v77 = vld [vmem:[#allocation4 + $0x38] sm:$0x1f]
    %vm78 = vcmask 105472
    %v80 = vsel %vm78, %v69, 0
    %vm82 = vcmask 1044480
    %v84 = vsel %vm82, %v74, 0
    %v87 = vsel %vm82, %v75, 0
    %v90 = vsel %vm82, %v76, 0
    %v93 = vsel %vm82, %v77, 0
    %95 = vmatprep.subr.mxu0 %v71
    %96 = vmatpush1.msra.mxu0 %v70
    %97 = vmatprep.subr.mxu0 %v87
    %98 = vmatpush1.msra.mxu0 %v84
    %99 = vmatprep.subr.mxu0 0.0
    %100 = vmatpush1.msra.mxu0 0.0
    %101 = vmatprep.subr.mxu0 0.0
    %102 = vmatpush1.msra.mxu0 0.0
    %103 = vmatprep.subr.mxu0 0.0
    %104 = vmatpush1.msra.mxu0 0.0
    %105 = vmatprep.subr.mxu0 0.0
    %106 = vmatpush1.msra.mxu0 0.0
    %107 = vmatprep.subr.mxu0 0.0
    %108 = vmatpush1.msra.mxu0 0.0
    %109 = vmatprep.subr.mxu0 0.0
    %110 = vmatpush1.msra.mxu0 0.0
    %111 = vmatprep.subr.mxu0 0.0
    %112 = vmatpush1.msra.mxu0 0.0
    %113 = vmatprep.subr.mxu0 0.0
    %114 = vmatpush1.msra.mxu0 0.0
    %115 = vmatprep.subr.mxu0 0.0
    %116 = vmatpush1.msra.mxu0 0.0
    %117 = vmatprep.subr.mxu0 0.0
    %118 = vmatpush1.msra.mxu0 0.0
    %119 = vmatprep.subr.mxu0 0.0
    %120 = vmatpush1.msra.mxu0 0.0
    %121 = vmatprep.subr.mxu0 0.0
    %122 = vmatpush1.msra.mxu0 0.0
    %123 = vmatprep.subr.mxu0 0.0
    %124 = vmatpush1.msra.mxu0 0.0
    %125 = vmatprep.subr.mxu0 0.0
    %126 = vmatpush1.msra.mxu0 0.0
    %127 = vmatprep.subr.mxu0 0.0
    %128 = vmatpush1.msra.mxu0 0.0
    %129 = vmatprep.subr.mxu0 0.0
    %130 = vmatpush1.msra.mxu0 0.0
    %131 = vmatprep.subr.mxu0 0.0
    %132 = vmatpush1.msra.mxu0 0.0
    %133 = vmatprep.subr.mxu0 0.0
    %134 = vmatpush1.msra.mxu0 0.0
    %135 = vmatprep.subr.mxu0 0.0
    %136 = vmatpush1.msra.mxu0 0.0
    %137 = vmatprep.subr.mxu0 0.0
    %138 = vmatpush1.msra.mxu0 0.0
    %139 = vmatprep.subr.mxu0 0.0
    %140 = vmatpush1.msra.mxu0 0.0
    %141 = vmatprep.subr.mxu0 0.0
    %142 = vmatpush1.msra.mxu0 0.0
    %143 = vmatprep.subr.mxu0 0.0
    %144 = vmatpush1.msra.mxu0 0.0
    %145 = vmatprep.subr.mxu0 0.0
    %146 = vmatpush1.msra.mxu0 0.0
    %147 = vmatprep.subr.mxu0 0.0
    %148 = vmatpush1.msra.mxu0 0.0
    %149 = vmatprep.subr.mxu0 0.0
    %150 = vmatpush1.msra.mxu0 0.0
    %151 = vmatprep.subr.mxu0 0.0
    %152 = vmatpush1.msra.mxu0 0.0
    %153 = vmatprep.subr.mxu0 0.0
    %154 = vmatpush1.msra.mxu0 0.0
    %155 = vmatprep.subr.mxu0 0.0
    %156 = vmatpush1.msra.mxu0 0.0
    %157 = vmatprep.subr.mxu0 0.0
    %158 = vmatpush1.msra.mxu0 0.0
    %159 = vmatprep.mubr.f32.mxu0 0.0
    %160 = vmatmul.mubr.f32.gmra.mrb[0].mxu0 %v80
    %v161 = vpop.f32.mrb[0].mxu0
    %v162 = vadd.f32 0.0, %v161
    %v163 = vpop.f32.mrb[0].mxu0
    %v164 = vadd.f32 0.0, %v163
    %165 = vdwg.mxu0
    %166 = vmatprep.subr.mxu0 %v73
    %167 = vmatpush1.msra.mxu0 %v72
    %168 = vmatprep.subr.mxu0 %v93
    %169 = vmatpush1.msra.mxu0 %v90
    %170 = vmatprep.subr.mxu0 0.0
    %171 = vmatpush1.msra.mxu0 0.0
    %172 = vmatprep.subr.mxu0 0.0
    %173 = vmatpush1.msra.mxu0 0.0
    %174 = vmatprep.subr.mxu0 0.0
    %175 = vmatpush1.msra.mxu0 0.0
    %176 = vmatprep.subr.mxu0 0.0
    %177 = vmatpush1.msra.mxu0 0.0
    %178 = vmatprep.subr.mxu0 0.0
    %179 = vmatpush1.msra.mxu0 0.0
    %180 = vmatprep.subr.mxu0 0.0
    %181 = vmatpush1.msra.mxu0 0.0
    %182 = vmatprep.subr.mxu0 0.0
    %183 = vmatpush1.msra.mxu0 0.0
    %184 = vmatprep.subr.mxu0 0.0
    %185 = vmatpush1.msra.mxu0 0.0
    %186 = vmatprep.subr.mxu0 0.0
    %187 = vmatpush1.msra.mxu0 0.0
    %188 = vmatprep.subr.mxu0 0.0
    %189 = vmatpush1.msra.mxu0 0.0
    %190 = vmatprep.subr.mxu0 0.0
    %191 = vmatpush1.msra.mxu0 0.0
    %192 = vmatprep.subr.mxu0 0.0
    %193 = vmatpush1.msra.mxu0 0.0
    %194 = vmatprep.subr.mxu0 0.0
    %195 = vmatpush1.msra.mxu0 0.0
    %196 = vmatprep.subr.mxu0 0.0
    %197 = vmatpush1.msra.mxu0 0.0
    %198 = vmatprep.subr.mxu0 0.0
    %199 = vmatpush1.msra.mxu0 0.0
    %200 = vmatprep.subr.mxu0 0.0
    %201 = vmatpush1.msra.mxu0 0.0
    %202 = vmatprep.subr.mxu0 0.0
    %203 = vmatpush1.msra.mxu0 0.0
    %204 = vmatprep.subr.mxu0 0.0
    %205 = vmatpush1.msra.mxu0 0.0
    %206 = vmatprep.subr.mxu0 0.0
    %207 = vmatpush1.msra.mxu0 0.0
    %208 = vmatprep.subr.mxu0 0.0
    %209 = vmatpush1.msra.mxu0 0.0
    %210 = vmatprep.subr.mxu0 0.0
    %211 = vmatpush1.msra.mxu0 0.0
    %212 = vmatprep.subr.mxu0 0.0
    %213 = vmatpush1.msra.mxu0 0.0
    %214 = vmatprep.subr.mxu0 0.0
    %215 = vmatpush1.msra.mxu0 0.0
    %216 = vmatprep.subr.mxu0 0.0
    %217 = vmatpush1.msra.mxu0 0.0
    %218 = vmatprep.subr.mxu0 0.0
    %219 = vmatpush1.msra.mxu0 0.0
    %220 = vmatprep.subr.mxu0 0.0
    %221 = vmatpush1.msra.mxu0 0.0
    %222 = vmatprep.subr.mxu0 0.0
    %223 = vmatpush1.msra.mxu0 0.0
    %224 = vmatprep.subr.mxu0 0.0
    %225 = vmatpush1.msra.mxu0 0.0
    %226 = vmatprep.subr.mxu0 0.0
    %227 = vmatpush1.msra.mxu0 0.0
    %228 = vmatprep.subr.mxu0 0.0
    %229 = vmatpush1.msra.mxu0 0.0
    %230 = vmatprep.mubr.f32.mxu0 0.0
    %231 = vmatmul.mubr.f32.gmra.mrb[0].mxu0 %v80
    %v232 = vpop.f32.mrb[0].mxu0
    %v233 = vadd.f32 0.0, %v232
    %v234 = vpop.f32.mrb[0].mxu0
    %v235 = vadd.f32 0.0, %v234
    %236 = vdwg.mxu0
    %v237 = vmax.f32 %v162, 0.0
    %v238 = vmax.f32 %v164, 0.0
    %v239 = vmax.f32 %v233, 0.0
    %v240 = vmax.f32 %v235, 0.0
    %241 = vst [vmem:[#allocation2] sm:$0x3f] %v237
    %242 = vst [vmem:[#allocation2 + $0x8] sm:$0x3f] %v238
    %243 = vst [vmem:[#allocation2 + $0x10] sm:$0x3f] %v239
    %244 = vst [vmem:[#allocation2 + $0x18] sm:$0x3f] %v240
    %v245 = vlaneseq
    %v246 = vand.u32 %v245, 127
    %vm247 = vcmp.lt.s32.totalorder %v246, 0
    %v248 = vsub.s32 0, %v246
    %v249 = vsel %vm247, %v248, %v246
    %v250 = vshrl.u32 %v249, 6
    %v251 = vand.u32 %v249, 63
    %v252 = vsub.s32 0, %v251
    %v253 = vsel %vm247, %v252, %v251
    %vm254 = vcmp.ne.s32.totalorder %v253, 0
    %vm255 = vcmp.lt.s32.totalorder %v253, 0
    %vm256 = vmand %vm255, %vm254
    %v257 = vadd.s32 %v253, 64
    %v258 = vsel %vm256, %v257, %v253
    %vm259 = vcmp.ge.s32.totalorder %v258, 8
    %v260 = vsel %vm259, 1, 0
    %v261 = vcvt.s32.f32 %v260
    %vm262 = vcmp.lt.s32.totalorder %v246, 0
    %v263 = vsub.s32 0, %v246
    %v264 = vsel %vm262, %v263, %v246
    %v265 = vshrl.u32 %v264, 3
    %v266 = vand.u32 %v264, 7
    %v267 = vsub.s32 0, %v266
    %v268 = vsel %vm262, %v267, %v266
    %vm269 = vcmp.ne.s32.totalorder %v268, 0
    %vm270 = vcmp.lt.s32.totalorder %v268, 0
    %vm271 = vmand %vm270, %vm269
    %v272 = vadd.s32 %v268, 8
    %v273 = vsel %vm271, %v272, %v268
    %vm274 = vcmp.ge.s32.totalorder %v273, 1
    %v275 = vsel %vm274, 1, 0
    %v276 = vcvt.s32.f32 %v275
    %v277 = vld [vmem:[#allocation9] sm:$0x3f]
    %v278 = vld [vmem:[#allocation4 + $0x10] sm:$0xff]
    %v279 = vld [vmem:[#allocation4 + $0x18] sm:$0xff]
    %v280 = vld [vmem:[#allocation4 + $0x30] sm:$0xf]
    %v281 = vld [vmem:[#allocation4 + $0x38] sm:$0xf]
    %v282 = vld [vmem:[#allocation2 + $0x10] sm:$0x3f]
    %v283 = vld [vmem:[#allocation2 + $0x18] sm:$0x3f]
    %285 = vrot.lane.b32.xlu0 %v261, 119
    %v286 = vpop.permute.xlu0 %285
    %v288 = vmul.f32 %v278, %v286
    %v289 = vmul.f32 %v279, %v286
    %v290 = vmul.f32 %v280, %v286
    %v291 = vmul.f32 %v281, %v286
    %v292 = vmul.f32 %v282, %v286
    %v293 = vmul.f32 %v283, %v286
    %295 = vrot.lane.b32.xlu0 %v276, 119
    %v296 = vpop.permute.xlu0 %295
    %v298 = vmul.f32 %v288, %v296
    %v299 = vmul.f32 %v289, %v296
    %v300 = vmul.f32 %v290, %v296
    %v301 = vmul.f32 %v291, %v296
    %v302 = vmul.f32 %v292, %v296
    %v303 = vmul.f32 %v293, %v296
    %v304 = vadd.f32 %v298, 0.0
    %v305 = vadd.f32 %v299, 0.0
    %v306 = vadd.f32 %v300, 0.0
    %v307 = vadd.f32 %v301, 0.0
    %309 = vset.pattern.permute.xlu0 0
    %310 = vperm.xlu0 %309, %v277
    %v311 = vpop.permute.xlu0 %310
    %v313 = vmul.f32 %v302, %v311
    %v314 = vmul.f32 %v303, %v311
    %v315 = vadd.f32 %v313, 0.0
    %v316 = vadd.f32 %v314, 0.0
    %v317 = vld [vmem:[#allocation4 + $0x8] sm:$0xff]
    %v318 = vld [vmem:[#allocation4 + $0x10] sm:$0xff]
    %v319 = vld [vmem:[#allocation4 + $0x28] sm:$0xf]
    %v320 = vld [vmem:[#allocation4 + $0x30] sm:$0xf]
    %v321 = vld [vmem:[#allocation2 + $0x8] sm:$0x3f]
    %v322 = vld [vmem:[#allocation2 + $0x10] sm:$0x3f]
    %323 = vrot.lane.b32.xlu0 %v261, 120
    %v324 = vpop.permute.xlu0 %323
    %v326 = vmul.f32 %v317, %v324
    %v327 = vmul.f32 %v318, %v324
    %v328 = vmul.f32 %v319, %v324
    %v329 = vmul.f32 %v320, %v324
    %v330 = vmul.f32 %v321, %v324
    %v331 = vmul.f32 %v322, %v324
    %336 = vrot.lane.b32.xlu0 %v326, 127
    %v337 = vpop.permute.xlu0 %336
    %338 = vrot.lane.b32.xlu0 %v327, 127
    %v339 = vpop.permute.xlu0 %338
    %340 = vrot.lane.b32.xlu0 %v328, 127
    %v341 = vpop.permute.xlu0 %340
    %342 = vrot.lane.b32.xlu0 %v329, 127
    %v343 = vpop.permute.xlu0 %342
    %vm344 = vcmask 1039360
    %v345 = vsel %vm344, %v337, %v339
    %v346 = vsel %vm344, %v341, %v343
    %v351 = vadd.f32 %v304, %v345
    %v352 = vadd.f32 %v305, %v339
    %v353 = vadd.f32 %v306, %v346
    %v354 = vadd.f32 %v307, %v343
    %355 = vset.pattern.permute.xlu0 1
    %356 = vperm.xlu0 %355, %v277
    %v357 = vpop.permute.xlu0 %356
    %v359 = vmul.f32 %v330, %v357
    %v360 = vmul.f32 %v331, %v357
    %363 = vrot.lane.b32.xlu0 %v359, 127
    %v364 = vpop.permute.xlu0 %363
    %365 = vrot.lane.b32.xlu0 %v360, 127
    %v366 = vpop.permute.xlu0 %365
    %v367 = vsel %vm344, %v364, %v366
    %v370 = vadd.f32 %v315, %v367
    %v371 = vadd.f32 %v316, %v366
    %v372 = vmul.f32 %v278, %v324
    %v373 = vmul.f32 %v279, %v324
    %v374 = vmul.f32 %v280, %v324
    %v375 = vmul.f32 %v281, %v324
    %v376 = vmul.f32 %v282, %v324
    %v377 = vmul.f32 %v283, %v324
    %382 = vrot.lane.b32.xlu0 %v372, 127
    %v383 = vpop.permute.xlu0 %382
    %384 = vrot.lane.b32.xlu0 %v373, 127
    %v385 = vpop.permute.xlu0 %384
    %386 = vrot.lane.b32.xlu0 %v374, 127
    %v387 = vpop.permute.xlu0 %386
    %388 = vrot.lane.b32.xlu0 %v375, 127
    %v389 = vpop.permute.xlu0 %388
    %v390 = vsel %vm344, %v383, %v385
    %v391 = vsel %vm344, %v387, %v389
    %v396 = vadd.f32 %v351, %v390
    %v397 = vadd.f32 %v352, %v385
    %v398 = vadd.f32 %v353, %v391
    %v399 = vadd.f32 %v354, %v389
    %400 = vset.pattern.permute.xlu0 2
    %401 = vperm.xlu0 %400, %v277
    %v402 = vpop.permute.xlu0 %401
    %v404 = vmul.f32 %v376, %v402
    %v405 = vmul.f32 %v377, %v402
    %408 = vrot.lane.b32.xlu0 %v404, 127
    %v409 = vpop.permute.xlu0 %408
    %410 = vrot.lane.b32.xlu0 %v405, 127
    %v411 = vpop.permute.xlu0 %410
    %v412 = vsel %vm344, %v409, %v411
    %v415 = vadd.f32 %v370, %v412
    %v416 = vadd.f32 %v371, %v411
    %v417 = vld [vmem:[#allocation4] sm:$0xff]
    %v418 = vld [vmem:[#allocation4 + $0x8] sm:$0xff]
    %v419 = vld [vmem:[#allocation4 + $0x20] sm:$0xf]
    %v420 = vld [vmem:[#allocation4 + $0x28] sm:$0xf]
    %v421 = vld [vmem:[#allocation2] sm:$0x3f]
    %v422 = vld [vmem:[#allocation2 + $0x8] sm:$0x3f]
    %423 = vrot.lane.b32.xlu0 %v276, 127
    %v424 = vpop.permute.xlu0 %423
    %v426 = vmul.f32 %v417, %v424
    %v427 = vmul.f32 %v418, %v424
    %v428 = vmul.f32 %v419, %v424
    %v429 = vmul.f32 %v420, %v424
    %v430 = vmul.f32 %v421, %v424
    %v431 = vmul.f32 %v422, %v424
    %436 = vrot.lane.b32.xlu0 %v426, 120
    %v437 = vpop.permute.xlu0 %436
    %438 = vrot.lane.b32.xlu0 %v427, 120
    %v439 = vpop.permute.xlu0 %438
    %440 = vrot.lane.b32.xlu0 %v428, 120
    %v441 = vpop.permute.xlu0 %440
    %442 = vrot.lane.b32.xlu0 %v429, 120
    %v443 = vpop.permute.xlu0 %442
    %vm444 = vcmask 982016
    %v445 = vsel %vm444, %v437, %v439
    %v446 = vsel %vm444, %v441, %v443
    %v451 = vadd.f32 %v396, %v445
    %v452 = vadd.f32 %v397, %v439
    %v453 = vadd.f32 %v398, %v446
    %v454 = vadd.f32 %v399, %v443
    %455 = vset.pattern.permute.xlu0 3
    %456 = vperm.xlu0 %455, %v277
    %v457 = vpop.permute.xlu0 %456
    %v459 = vmul.f32 %v430, %v457
    %v460 = vmul.f32 %v431, %v457
    %463 = vrot.lane.b32.xlu0 %v459, 120
    %v464 = vpop.permute.xlu0 %463
    %465 = vrot.lane.b32.xlu0 %v460, 120
    %v466 = vpop.permute.xlu0 %465
    %v467 = vsel %vm444, %v464, %v466
    %v470 = vadd.f32 %v415, %v467
    %v471 = vadd.f32 %v416, %v466
    %v472 = vld [vmem:[#allocation4] sm:$0xff]
    %v473 = vld [vmem:[#allocation4 + $0x20] sm:$0xf]
    %v474 = vld [vmem:[#allocation2] sm:$0x3f]
    %477 = vrot.lane.b32.xlu0 %v472, 119
    %v478 = vpop.permute.xlu0 %477
    %479 = vrot.lane.b32.xlu0 %v473, 119
    %v480 = vpop.permute.xlu0 %479
    %v483 = vadd.f32 %v451, %v478
    %v484 = vadd.f32 %v452, %v478
    %v485 = vadd.f32 %v453, %v480
    %v486 = vadd.f32 %v454, %v480
    %487 = vset.pattern.permute.xlu0 4
    %488 = vperm.xlu0 %487, %v277
    %v489 = vpop.permute.xlu0 %488
    %v491 = vmul.f32 %v474, %v489
    %493 = vrot.lane.b32.xlu0 %v491, 119
    %v494 = vpop.permute.xlu0 %493
    %v496 = vadd.f32 %v470, %v494
    %v497 = vadd.f32 %v471, %v494
    %500 = vrot.lane.b32.xlu0 %v418, 119
    %v501 = vpop.permute.xlu0 %500
    %502 = vrot.lane.b32.xlu0 %v420, 119
    %v503 = vpop.permute.xlu0 %502
    %v506 = vadd.f32 %v483, %v501
    %v507 = vadd.f32 %v484, %v501
    %v508 = vadd.f32 %v485, %v503
    %v509 = vadd.f32 %v486, %v503
    %510 = vset.pattern.permute.xlu0 5
    %511 = vperm.xlu0 %510, %v277
    %v512 = vpop.permute.xlu0 %511
    %v514 = vmul.f32 %v422, %v512
    %516 = vrot.lane.b32.xlu0 %v514, 119
    %v517 = vpop.permute.xlu0 %516
    %v519 = vadd.f32 %v496, %v517
    %v520 = vadd.f32 %v497, %v517
    %v521 = vmul.f32 %v278, %v424
    %v522 = vmul.f32 %v279, %v424
    %v523 = vmul.f32 %v280, %v424
    %v524 = vmul.f32 %v281, %v424
    %v525 = vmul.f32 %v282, %v424
    %v526 = vmul.f32 %v283, %v424
    %531 = vrot.lane.b32.xlu0 %v521, 120
    %v532 = vpop.permute.xlu0 %531
    %533 = vrot.lane.b32.xlu0 %v522, 120
    %v534 = vpop.permute.xlu0 %533
    %535 = vrot.lane.b32.xlu0 %v523, 120
    %v536 = vpop.permute.xlu0 %535
    %537 = vrot.lane.b32.xlu0 %v524, 120
    %v538 = vpop.permute.xlu0 %537
    %v539 = vsel %vm444, %v532, %v534
    %v540 = vsel %vm444, %v536, %v538
    %v545 = vadd.f32 %v506, %v539
    %v546 = vadd.f32 %v507, %v534
    %v547 = vadd.f32 %v508, %v540
    %v548 = vadd.f32 %v509, %v538
    %549 = vset.pattern.permute.xlu0 6
    %550 = vperm.xlu0 %549, %v277
    %v551 = vpop.permute.xlu0 %550
    %v553 = vmul.f32 %v525, %v551
    %v554 = vmul.f32 %v526, %v551
    %557 = vrot.lane.b32.xlu0 %v553, 120
    %v558 = vpop.permute.xlu0 %557
    %559 = vrot.lane.b32.xlu0 %v554, 120
    %v560 = vpop.permute.xlu0 %559
    %v561 = vsel %vm444, %v558, %v560
    %v564 = vadd.f32 %v519, %v561
    %v565 = vadd.f32 %v520, %v560
    %568 = vrot.lane.b32.xlu0 %v318, 119
    %v569 = vpop.permute.xlu0 %568
    %570 = vrot.lane.b32.xlu0 %v320, 119
    %v571 = vpop.permute.xlu0 %570
    %v574 = vadd.f32 %v545, %v569
    %v575 = vadd.f32 %v546, %v569
    %v576 = vadd.f32 %v547, %v571
    %v577 = vadd.f32 %v548, %v571
    %578 = vset.pattern.permute.xlu0 7
    %579 = vperm.xlu0 %578, %v277
    %v580 = vpop.permute.xlu0 %579
    %v582 = vmul.f32 %v322, %v580
    %584 = vrot.lane.b32.xlu0 %v582, 119
    %v585 = vpop.permute.xlu0 %584
    %v587 = vadd.f32 %v564, %v585
    %v588 = vadd.f32 %v565, %v585
    %591 = vrot.lane.b32.xlu0 %v279, 119
    %v592 = vpop.permute.xlu0 %591
    %593 = vrot.lane.b32.xlu0 %v281, 119
    %v594 = vpop.permute.xlu0 %593
    %v597 = vadd.f32 %v574, %v592
    %v598 = vadd.f32 %v575, %v592
    %v599 = vadd.f32 %v576, %v594
    %v600 = vadd.f32 %v577, %v594
    %601 = vset.pattern.permute.xlu0 8
    %602 = vperm.xlu0 %601, %v277
    %v603 = vpop.permute.xlu0 %602
    %v605 = vmul.f32 %v283, %v603
    %607 = vrot.lane.b32.xlu0 %v605, 119
    %v608 = vpop.permute.xlu0 %607
    %v610 = vadd.f32 %v587, %v608
    %v611 = vadd.f32 %v588, %v608
    %616 = vrot.lane.b32.xlu0 %v597, 9
    %v617 = vpop.permute.xlu0 %616
    %618 = vrot.lane.b32.xlu0 %v598, 9
    %v619 = vpop.permute.xlu0 %618
    %620 = vrot.lane.b32.xlu0 %v599, 9
    %v621 = vpop.permute.xlu0 %620
    %622 = vrot.lane.b32.xlu0 %v600, 9
    %v623 = vpop.permute.xlu0 %622
    %vm624 = vcmask 72704
    %v625 = vsel %vm624, %v617, %v619
    %v626 = vsel %vm624, %v621, %v623
    %629 = vst [vmem:[#allocation3] sm:$0xff] %v625
    %630 = vst [vmem:[#allocation3 + $0x8] sm:$0xf] %v626
    %633 = vrot.lane.b32.xlu0 %v610, 9
    %v634 = vpop.permute.xlu0 %633
    %635 = vrot.lane.b32.xlu0 %v611, 9
    %v636 = vpop.permute.xlu0 %635
    %v637 = vsel %vm624, %v634, %v636
    %639 = vst [vmem:[#allocation3 + $0xc] sm:$0x3f] %v637
    %640 = vst [vmem:[#allocation3 + $0x12] sm:$0x1] 1.0
    %v641 = vld [vmem:[#allocation10] sm:$0xff]
    %v642 = vld [vmem:[#allocation10 + $0x8] sm:$0xff]
    %v643 = vld [vmem:[#allocation10 + $0x10] sm:$0xff]
    %v644 = vld [vmem:[#allocation3] sm:$0xff]
    %v645 = vld [vmem:[#allocation3 + $0x8] sm:$0xff]
    %v646 = vld [vmem:[#allocation3 + $0x10] sm:$0x7]
    %vm647 = vcmask 154624
    %v649 = vsel %vm647, %v641, 0
    %v652 = vsel %vm647, %v642, 0
    %v655 = vsel %vm647, %v643, 0
    %vm657 = vcmask 1042432
    %v659 = vsel %vm657, %v646, 0
    %661 = vmatprep.subr.mxu0 0.0
    %662 = vmatpush1.msra.mxu0 %v644
    %663 = vmatprep.subr.mxu0 0.0
    %664 = vmatpush1.msra.mxu0 %v645
    %665 = vmatprep.subr.mxu0 0.0
    %666 = vmatpush1.msra.mxu0 %v659
    %667 = vmatprep.subr.mxu0 0.0
    %668 = vmatpush1.msra.mxu0 0.0
    %669 = vmatprep.subr.mxu0 0.0
    %670 = vmatpush1.msra.mxu0 0.0
    %671 = vmatprep.subr.mxu0 0.0
    %672 = vmatpush1.msra.mxu0 0.0
    %673 = vmatprep.subr.mxu0 0.0
    %674 = vmatpush1.msra.mxu0 0.0
    %675 = vmatprep.subr.mxu0 0.0
    %676 = vmatpush1.msra.mxu0 0.0
    %677 = vmatprep.subr.mxu0 0.0
    %678 = vmatpush1.msra.mxu0 0.0
    %679 = vmatprep.subr.mxu0 0.0
    %680 = vmatpush1.msra.mxu0 0.0
    %681 = vmatprep.subr.mxu0 0.0
    %682 = vmatpush1.msra.mxu0 0.0
    %683 = vmatprep.subr.mxu0 0.0
    %684 = vmatpush1.msra.mxu0 0.0
    %685 = vmatprep.subr.mxu0 0.0
    %686 = vmatpush1.msra.mxu0 0.0
    %687 = vmatprep.subr.mxu0 0.0
    %688 = vmatpush1.msra.mxu0 0.0
    %689 = vmatprep.subr.mxu0 0.0
    %690 = vmatpush1.msra.mxu0 0.0
    %691 = vmatprep.subr.mxu0 0.0
    %692 = vmatpush1.msra.mxu0 0.0
    %693 = vmatprep.subr.mxu0 0.0
    %694 = vmatpush1.msra.mxu0 0.0
    %695 = vmatprep.subr.mxu0 0.0
    %696 = vmatpush1.msra.mxu0 0.0
    %697 = vmatprep.subr.mxu0 0.0
    %698 = vmatpush1.msra.mxu0 0.0
    %699 = vmatprep.subr.mxu0 0.0
    %700 = vmatpush1.msra.mxu0 0.0
    %701 = vmatprep.subr.mxu0 0.0
    %702 = vmatpush1.msra.mxu0 0.0
    %703 = vmatprep.subr.mxu0 0.0
    %704 = vmatpush1.msra.mxu0 0.0
    %705 = vmatprep.subr.mxu0 0.0
    %706 = vmatpush1.msra.mxu0 0.0
    %707 = vmatprep.subr.mxu0 0.0
    %708 = vmatpush1.msra.mxu0 0.0
    %709 = vmatprep.subr.mxu0 0.0
    %710 = vmatpush1.msra.mxu0 0.0
    %711 = vmatprep.subr.mxu0 0.0
    %712 = vmatpush1.msra.mxu0 0.0
    %713 = vmatprep.subr.mxu0 0.0
    %714 = vmatpush1.msra.mxu0 0.0
    %715 = vmatprep.subr.mxu0 0.0
    %716 = vmatpush1.msra.mxu0 0.0
    %717 = vmatprep.subr.mxu0 0.0
    %718 = vmatpush1.msra.mxu0 0.0
    %719 = vmatprep.subr.mxu0 0.0
    %720 = vmatpush1.msra.mxu0 0.0
    %721 = vmatprep.subr.mxu0 0.0
    %722 = vmatpush1.msra.mxu0 0.0
    %723 = vmatprep.subr.mxu0 0.0
    %724 = vmatpush1.msra.mxu0 0.0
    %725 = vmatprep.mubr.f32.mxu0 0.0
    %726 = vmatmul.mubr.f32.gmra.mrb[0].mxu0 %v649
    %v727 = vpop.f32.mrb[0].mxu0
    %v728 = vadd.f32 0.0, %v727
    %v729 = vpop.f32.mrb[0].mxu0
    %730 = vmatprep.mubr.f32.mxu0 0.0
    %731 = vmatmul.mubr.f32.gmra.mrb[0].mxu0 %v652
    %v732 = vpop.f32.mrb[0].mxu0
    %v733 = vadd.f32 0.0, %v732
    %v734 = vpop.f32.mrb[0].mxu0
    %735 = vmatprep.mubr.f32.mxu0 0.0
    %736 = vmatmul.mubr.f32.gmra.mrb[0].mxu0 %v655
    %v737 = vpop.f32.mrb[0].mxu0
    %v738 = vadd.f32 0.0, %v737
    %v739 = vpop.f32.mrb[0].mxu0
    %740 = vdwg.mxu0
    %v741 = vmax.f32 %v728, 0.0
    %v742 = vmax.f32 %v733, 0.0
    %v743 = vmax.f32 %v738, 0.0
    %744 = vst [vmem:[#allocation12] sm:$0xff] %v741
    %745 = vst [vmem:[#allocation12 + $0x8] sm:$0xff] %v742
    %746 = vst [vmem:[#allocation12 + $0x10] sm:$0xff] %v743
    // Predicated region
    $region34: #{tpu_custom_call.1} parent=1 // pred_check
      _
    $region35: #{tpu_custom_call.1} parent=1 // pred_check_branch
      %748 = sbr.rel (0) target = $region37
    $region36: #{tpu_custom_call.1} parent=1 // pred_region
      %s750 = ssub.s32 384, 384
      %751 = vsyncadd [#allocation6], %s750
      %s752 = sshll.u32 [#allocation12], 4
      %s753 = int_to_ptr.vmem [resolvable:$true] %s752
      %758 = dma.vmem_to_hbm [thread:$0]  %s753, 384, %s4, [#allocation6], 128, 128, 8
    $region37: #{tpu_custom_call.1} parent=1 // pred_fallthru
      _
    // Predicated region
    $region38: #{tpu_custom_call.1} parent=1 // pred_check
      _
    $region39: #{tpu_custom_call.1} parent=1 // pred_check_branch
      %760 = sbr.rel (0) target = $region41
    $region40: #{tpu_custom_call.1} parent=1 // pred_region
      %761 = dma.done [#allocation6], 384
    $region41: #{tpu_custom_call.1} parent=1 // pred_fallthru
      _
    %762 = vsyncpa [#allocation5], 1
    %763 = vsyncpa [#allocation8], 1
    %764 = vsyncpa [#allocation11], 1
    %765 = vsyncpa [#allocation6], 1

</llo_original>
